<compile_context>
chip_gen: v6e
topology: v6e:2x2x1
jax: 0.10.0
libtpu: 0.0.40
codegen_flags: <defaults>
</compile_context>

<pallas_src>
import jax
import jax.numpy as jnp
from jax.experimental import pallas as pl
from jax.experimental.pallas import tpu as pltpu


def _tpu_vmem_bytes():
    try:
        return int(pltpu.get_tpu_info().vmem_capacity_bytes)
    except Exception:
        return 64 << 20  # conservative fallback: safe on every generation


def _budget_and_limits(C, itemsize):
    """Per-input storage-block budget + VMEM limit, generation aware."""
    vmem = _tpu_vmem_bytes()
    # Headroom under physical VMEM for Mosaic internal scratch / semaphores.
    limit_cap = min(int(vmem * 0.80), 100 << 20)
    # Working set per grid step, relative to one input storage block:
    #   4 * in_block                 two inputs, double buffered (storage dtype)
    #   2 * in_block * (4/itemsize)  in-kernel f32 upcast temps of x and y
    #   4 * out_block                f32 accumulator block + nx/ny/sq temps
    mult = 4.0 + 2.0 * (4.0 / itemsize) + 4.0 * (4.0 / (C * itemsize))
    budget = max(1 << 20, int(0.75 * limit_cap / mult))
    return budget, limit_cap, vmem


def _pick_tiles(B, C, S, itemsize, budget_bytes):
    """Choose (B_TILE, S_TILE) under a per-input-block byte budget."""
    row_bytes = C * S * itemsize
    if row_bytes <= budget_bytes or S <= 128:
        # Full spatial extent: one contiguous HBM run per (b, c) row, no lane mask.
        s_tile = S
    else:
        s_tile = (budget_bytes // (C * itemsize)) // 128 * 128
        s_tile = max(128, min(s_tile, (S // 128) * 128))
    block_bytes = max(C * s_tile * itemsize, 1)
    b_tile = max(1, min(B, budget_bytes // block_bytes))
    if b_tile >= 8:
        b_tile -= b_tile % 8  # packed-sublane accumulator rows -> unmasked stores
    return int(b_tile), int(s_tile)


def _make_kernel(B, S, B_TILE, S_TILE, spatial_parallel):
    mask_s = (S % S_TILE) != 0
    mask_b = (B % B_TILE) != 0

    def kernel(x_ref, y_ref, o_ref):
        if spatial_parallel:
            s_idx, b_idx = pl.program_id(0), pl.program_id(1)
        else:
            b_idx, s_idx = pl.program_id(0), pl.program_id(1)
        acc_idx = pl.program_id(1)  # accumulation axis is always last

        x = x_ref[...].astype(jnp.float32)
        y = y_ref[...].astype(jnp.float32)
        # Frobenius norm over the channel axis (PyTorch dim=1).
        nx = jnp.sqrt(jnp.sum(x * x, axis=1))  # (B_TILE, S_TILE)
        ny = jnp.sqrt(jnp.sum(y * y, axis=1))  # (B_TILE, S_TILE)
        d = nx - ny
        sq = d * d

        # Ragged tails handled in-kernel (replaces wrapper jnp.pad, which would
        # cost an extra full HBM read + write of both inputs).
        if mask_s or mask_b:
            ok = None
            if mask_s:
                lane = jax.lax.broadcasted_iota(jnp.int32, (B_TILE, S_TILE), 1)
                ok = (s_idx * S_TILE + lane) < S
            if mask_b:
                row = jax.lax.broadcasted_iota(jnp.int32, (B_TILE, S_TILE), 0)
                okb = (b_idx * B_TILE + row) < B
                ok = okb if ok is None else jnp.logical_and(ok, okb)
            sq = jnp.where(ok, sq, 0.0)

        @pl.when(acc_idx == 0)
        def _():
            o_ref[...] = sq

        @pl.when(acc_idx != 0)
        def _():
            o_ref[...] += sq

    return kernel


def frobenius_norm_loss(x, y, *, _budget_bytes=None):
    """Pallas implementation of FrobeniusNormLoss.forward(input, target)."""
    assert x.shape == y.shape, "input and target must have the same shape"
    assert x.ndim >= 2, "need at least (B, C)"

    B, C = int(x.shape[0]), int(x.shape[1])
    S = 1
    for s in x.shape[2:]:
        S *= int(s)
    S = max(S, 1)

    itemsize = jnp.dtype(x.dtype).itemsize
    budget, limit_cap, vmem_phys = _budget_and_limits(C, itemsize)
    if _budget_bytes is not None:
        budget = int(_budget_bytes)
    B_TILE, S_TILE = _pick_tiles(B, C, S, itemsize, budget)

    n_s = pl.cdiv(S, S_TILE)
    n_b = pl.cdiv(B, B_TILE)

    # Keep the "parallel" grid axis >= 2 tiles when possible so both v7x
    # TensorCores get work; the accumulation ("arbitrary") axis is always last.
    spatial_parallel = not (n_s == 1 and n_b > 1)
    if spatial_parallel:
        grid = (n_s, n_b)
        in_map = lambda s, b: (b, 0, s)
        n_par = n_s
    else:
        grid = (n_b, n_s)
        in_map = lambda b, s: (b, 0, s)
        n_par = n_b

    # Contiguous NCHW -> (B, C, S) is a free view; storage dtype is kept, the
    # f32 upcast happens in-kernel (hidden under the DMA).
    x3 = x.reshape(B, C, S)
    y3 = y.reshape(B, C, S)

    # VMEM plan (includes the f32 upcast temporaries of bf16/f16 blocks).
    in_block = B_TILE * C * S_TILE * itemsize
    f32_block = B_TILE * C * S_TILE * 4
    out_block = B_TILE * S_TILE * 4
    working = 4 * in_block + 2 * f32_block + 4 * out_block + (1 << 20)
    vmem_limit = int(limit_cap)
    if working > vmem_limit:
        # TODO(synk): tile the channel axis (separate sum-of-squares accumulation
        # pass) for C so large that a (1, C, 128) block overflows VMEM; until
        # then just raise the limit toward physical VMEM.
        vmem_limit = int(min(vmem_phys * 0.95, working * 1.2))

    kernel = _make_kernel(B, S, B_TILE, S_TILE, spatial_parallel)

    partial = pl.pallas_call(
        kernel,
        out_shape=jax.ShapeDtypeStruct((n_par, B_TILE, S_TILE), jnp.float32),
        grid_spec=pltpu.PrefetchScalarGridSpec(
            num_scalar_prefetch=0,
            grid=grid,
            in_specs=[
                pl.BlockSpec((B_TILE, C, S_TILE), in_map),
                pl.BlockSpec((B_TILE, C, S_TILE), in_map),
            ],
            # Same block index across the (last) accumulation axis -> resident
            # lane-dense f32 accumulator; one writeback per parallel tile.
            out_specs=pl.BlockSpec((None, B_TILE, S_TILE), lambda p, a: (p, 0, 0)),
        ),
        compiler_params=pltpu.CompilerParams(
            dimension_semantics=("parallel", "arbitrary"),
            vmem_limit_bytes=vmem_limit,
        ),
    )(x3, y3)

    # Mean over the ORIGINAL B * S positions (masked tails contributed exactly 0).
    return jnp.sum(partial) * (1.0 / float(B * S))


def frobenius_norm_loss_ref(x, y):
    """Pure-JAX reference mirroring the PyTorch module (f32 math)."""
    nx = jnp.sqrt(jnp.sum(jnp.square(x.astype(jnp.float32)), axis=1))
    ny = jnp.sqrt(jnp.sum(jnp.square(y.astype(jnp.float32)), axis=1))
    return jnp.mean((nx - ny) ** 2)


if __name__ == "__main__":
    key = jax.random.PRNGKey(0)
    kx, ky = jax.random.split(key)

    # NCHW example from the module: batch=2, channels=4, spatial=16x16.
    x = jax.random.normal(kx, (2, 4, 16, 16), dtype=jnp.float32)
    y = jax.random.normal(ky, (2, 4, 16, 16), dtype=jnp.float32)
    loss = jax.block_until_ready(frobenius_norm_loss(x, y))
    ref = frobenius_norm_loss_ref(x, y)
    assert jnp.allclose(loss, ref, rtol=1e-5, atol=1e-6), (loss, ref)

    # bf16, ragged batch tail (B=3, B_TILE=2) + batch-parallel orientation
    # (single spatial tile), tiny forced budget to exercise the tiled path.
    x2 = jax.random.normal(kx, (3, 6, 10, 13), dtype=jnp.bfloat16)
    y2 = jax.random.normal(ky, (3, 6, 10, 13), dtype=jnp.bfloat16)
    loss2 = jax.block_until_ready(frobenius_norm_loss(x2, y2, _budget_bytes=4096))
    ref2 = frobenius_norm_loss_ref(x2, y2)
    assert jnp.allclose(loss2, ref2, rtol=1e-3, atol=1e-4), (loss2, ref2)

    # f32, ragged spatial tail (S=300 tiled to 256 lanes) + multi-step batch
    # accumulation over the resident output block.
    x3 = jax.random.normal(kx, (3, 4, 5, 60), dtype=jnp.float32)
    y3 = jax.random.normal(ky, (3, 4, 5, 60), dtype=jnp.float32)
    loss3 = jax.block_until_ready(frobenius_norm_loss(x3, y3, _budget_bytes=4096))
    ref3 = frobenius_norm_loss_ref(x3, y3)
    assert jnp.allclose(loss3, ref3, rtol=1e-5, atol=1e-6), (loss3, ref3)

    print("KERNEL_OK")
</pallas_src>

<mosaic_0001>
module attributes {stable_mosaic.version = 11 : i64} {
  func.func @kernel(%arg0: i32, %arg1: i32, %arg2: memref<2x4x256xf32, #tpu.memory_space<vmem>>, %arg3: memref<2x4x256xf32, #tpu.memory_space<vmem>>, %arg4: memref<1x2x256xf32, #tpu.memory_space<vmem>>) attributes {dimension_semantics = [#tpu.dimension_semantics<parallel>, #tpu.dimension_semantics<arbitrary>], iteration_bounds = array<i64: 1, 1>, scalar_prefetch = 0 : i64, scratch_operands = 0 : i64, tpu.core_type = #tpu.core_type<tc>, window_params = [{transform_indices = @transform_0, window_bounds = array<i64: 2, 4, 256>}, {transform_indices = @transform_1, window_bounds = array<i64: 2, 4, 256>}, {transform_indices = @transform_2, window_bounds = array<i64: 1, 2, 256>}]} {
    %c0 = arith.constant 0 : index
    %c0_0 = arith.constant 0 : index
    %c0_1 = arith.constant 0 : index
    %0 = vector.load %arg2[%c0, %c0_0, %c0_1] : memref<2x4x256xf32, #tpu.memory_space<vmem>>, vector<2x4x256xf32>
    %c0_2 = arith.constant 0 : index
    %c0_3 = arith.constant 0 : index
    %c0_4 = arith.constant 0 : index
    %1 = vector.load %arg3[%c0_2, %c0_3, %c0_4] : memref<2x4x256xf32, #tpu.memory_space<vmem>>, vector<2x4x256xf32>
    %2 = arith.mulf %0, %0 : vector<2x4x256xf32>
    %cst = arith.constant dense<0.000000e+00> : vector<2x256xf32>
    %3 = vector.multi_reduction <add>, %2, %cst [1] : vector<2x4x256xf32> to vector<2x256xf32>
    %4 = math.sqrt %3 : vector<2x256xf32>
    %5 = arith.mulf %1, %1 : vector<2x4x256xf32>
    %cst_5 = arith.constant dense<0.000000e+00> : vector<2x256xf32>
    %6 = vector.multi_reduction <add>, %5, %cst_5 [1] : vector<2x4x256xf32> to vector<2x256xf32>
    %7 = math.sqrt %6 : vector<2x256xf32>
    %8 = arith.subf %4, %7 : vector<2x256xf32>
    %9 = arith.mulf %8, %8 : vector<2x256xf32>
    %c0_i32 = arith.constant 0 : i32
    %10 = arith.cmpi eq, %arg1, %c0_i32 : i32
    %11 = arith.extui %10 : i1 to i32
    %c0_i32_6 = arith.constant 0 : i32
    %12 = arith.cmpi ne, %11, %c0_i32_6 : i32
    scf.if %12 {
      %c0_9 = arith.constant 0 : index
      %c0_10 = arith.constant 0 : index
      %c0_11 = arith.constant 0 : index
      %16 = vector.load %arg4[%c0_9, %c0_10, %c0_11] : memref<1x2x256xf32, #tpu.memory_space<vmem>>, vector<1x2x256xf32>
      %17 = vector.shape_cast %16 : vector<1x2x256xf32> to vector<2x256xf32>
      %18 = vector.shape_cast %9 : vector<2x256xf32> to vector<1x2x256xf32>
      tpu.vector_store %arg4[%c0_9, %c0_10, %c0_11], %18 {strides = array<i32>} : memref<1x2x256xf32, #tpu.memory_space<vmem>>, vector<1x2x256xf32>,
    } else {
    }
    %c0_i32_7 = arith.constant 0 : i32
    %13 = arith.cmpi ne, %arg1, %c0_i32_7 : i32
    %14 = arith.extui %13 : i1 to i32
    %c0_i32_8 = arith.constant 0 : i32
    %15 = arith.cmpi ne, %14, %c0_i32_8 : i32
    scf.if %15 {
      %c0_9 = arith.constant 0 : index
      %c0_10 = arith.constant 0 : index
      %c0_11 = arith.constant 0 : index
      %16 = vector.load %arg4[%c0_9, %c0_10, %c0_11] : memref<1x2x256xf32, #tpu.memory_space<vmem>>, vector<1x2x256xf32>
      %17 = vector.shape_cast %16 : vector<1x2x256xf32> to vector<2x256xf32>
      %18 = arith.addf %17, %9 : vector<2x256xf32>
      %c0_12 = arith.constant 0 : index
      %c0_13 = arith.constant 0 : index
      %c0_14 = arith.constant 0 : index
      %19 = vector.load %arg4[%c0_12, %c0_13, %c0_14] : memref<1x2x256xf32, #tpu.memory_space<vmem>>, vector<1x2x256xf32>
      %20 = vector.shape_cast %19 : vector<1x2x256xf32> to vector<2x256xf32>
      %21 = vector.shape_cast %18 : vector<2x256xf32> to vector<1x2x256xf32>
      tpu.vector_store %arg4[%c0_12, %c0_13, %c0_14], %21 {strides = array<i32>} : memref<1x2x256xf32, #tpu.memory_space<vmem>>, vector<1x2x256xf32>,
    } else {
    }
    return
  }
  func.func @transform_0(%arg0: i32, %arg1: i32) -> (i32, i32, i32) {
    %c0_i32 = arith.constant 0 : i32
    %c0_i32_0 = arith.constant 0 : i32
    return %arg1, %c0_i32, %arg0 : i32, i32, i32
  }
  func.func @transform_1(%arg0: i32, %arg1: i32) -> (i32, i32, i32) {
    %c0_i32 = arith.constant 0 : i32
    %c0_i32_0 = arith.constant 0 : i32
    return %arg1, %c0_i32, %arg0 : i32, i32, i32
  }
  func.func @transform_2(%arg0: i32, %arg1: i32) -> (i32, i32, i32) {
    %c0_i32 = arith.constant 0 : i32
    %c0_i32_0 = arith.constant 0 : i32
    %c0_i32_1 = arith.constant 0 : i32
    return %arg0, %c0_i32, %c0_i32_0 : i32, i32, i32
  }
}

</mosaic_0001>

<llo_original>
// kernel: tpu_custom_call.1
$region0: #{tpu_custom_call.1}
  #allocation0 [shape = 'u32[]', space=smem, size = 0x4, offset = 0x4, fixed_abs, tag = 'smem constant byte address 0x4 - core index']
  #allocation1 [shape = 'u32[144,128]{1,0:T(1,128)}', space=vmem, size = 0x12000, scoped, tag = 'internal scratch']
  %s0 = inlined_call_operand.hbm [shape: f32[2,4,256], index: 0, kind: input, shape index: {}]
  %s1 = inlined_call_operand.hbm [shape: f32[2,4,256], index: 1, kind: input, shape index: {}]
  %s2 = inlined_call_operand.hbm [shape: f32[1,2,256], index: 2, kind: output, shape index: {}]
  %s3 = sld [smem:[#allocation0]]
  $region34: #{tpu_custom_call.1} parent=0
    _
  %s5 = ssub.s32 1, %s3
  %s6 = scalar_select 0, %s5, %s3
  $region1: #{tpu_custom_call.1} parent=0
    #allocation2 [shape = 'u8[8192]{0}', space=vmem, size = 0x2000, scoped, tag = 'input window, operand 0, single buffered']
    #allocation3 [shape = 's32[1]{0}', space=sflag, size = 0x4, scoped, tag = 'scoped memory for tpu_custom_call.1']
    #allocation4 [shape = 's32[1]{0}', space=sflag, size = 0x4, scoped, tag = 'scoped memory for tpu_custom_call.1']
    #allocation5 [shape = 'u8[8192]{0}', space=vmem, size = 0x2000, scoped, tag = 'input window, operand 1, single buffered']
    #allocation6 [shape = 's32[1]{0}', space=sflag, size = 0x4, scoped, tag = 'scoped memory for tpu_custom_call.1']
    #allocation7 [shape = 'u8[2048]{0}', space=vmem, size = 0x800, scoped, tag = 'output window, operand 0, single buffered']
    %7 = vsyncpa [#allocation3], 0
    %8 = vsyncpa [#allocation6], 0
    %9 = vsyncpa [#allocation4], 0
    // Predicated region
    $region2: #{tpu_custom_call.1} parent=1 // pred_check
      _
    $region3: #{tpu_custom_call.1} parent=1 // pred_check_branch
      %11 = sbr.rel (0) target = $region5
    $region4: #{tpu_custom_call.1} parent=1 // pred_region
      %s13 = ssub.s32 256, 256
      %14 = vsyncadd [#allocation3], %s13
      %s15 = sshll.u32 [#allocation2], 4
      %s16 = int_to_ptr.vmem [resolvable:$true] %s15
      %21 = dma.hbm_to_vmem [thread:$0]  %s0, 256, %s16, [#allocation3], 128, 128, 8
    $region5: #{tpu_custom_call.1} parent=1 // pred_fallthru
      _
    // Predicated region
    $region6: #{tpu_custom_call.1} parent=1 // pred_check
      _
    $region7: #{tpu_custom_call.1} parent=1 // pred_check_branch
      %23 = sbr.rel (0) target = $region9
    $region8: #{tpu_custom_call.1} parent=1 // pred_region
      %s25 = ssub.s32 256, 256
      %26 = vsyncadd [#allocation6], %s25
      %s27 = sshll.u32 [#allocation5], 4
      %s28 = int_to_ptr.vmem [resolvable:$true] %s27
      %33 = dma.hbm_to_vmem [thread:$0]  %s1, 256, %s28, [#allocation6], 128, 128, 8
    $region9: #{tpu_custom_call.1} parent=1 // pred_fallthru
      _
    // Predicated region
    $region10: #{tpu_custom_call.1} parent=1 // pred_check
      _
    $region11: #{tpu_custom_call.1} parent=1 // pred_check_branch
      %35 = sbr.rel (0) target = $region13
    $region12: #{tpu_custom_call.1} parent=1 // pred_region
      %36 = dma.done [#allocation3], 256
    $region13: #{tpu_custom_call.1} parent=1 // pred_fallthru
      _
    // Predicated region
    $region14: #{tpu_custom_call.1} parent=1 // pred_check
      _
    $region15: #{tpu_custom_call.1} parent=1 // pred_check_branch
      %38 = sbr.rel (0) target = $region17
    $region16: #{tpu_custom_call.1} parent=1 // pred_region
      %39 = dma.done [#allocation6], 256
    $region17: #{tpu_custom_call.1} parent=1 // pred_fallthru
      _
    %v40 = vld [vmem:[#allocation2] sm:$0xff]
    %v41 = vld [vmem:[#allocation2 + $0x8] sm:$0xff]
    %v42 = vld [vmem:[#allocation5] sm:$0xff]
    %v43 = vld [vmem:[#allocation5 + $0x8] sm:$0xff]
    %v44 = vmul.f32 %v40, %v40
    %v45 = vmul.f32 %v41, %v41
    %v48 = vcombine.high %v44, %v44
    %v49 = vcombine.high %v45, %v45
    %vm52 = vcmask 1043456
    %v53 = vsel %vm52, %v44, 0.0
    %v54 = vrot.slane %v53, 4
    %v55 = vadd.f32 %v53, %v54
    %v56 = vrot.slane %v55, 2
    %v57 = vadd.f32 %v55, %v56
    %v58 = vrot.slane %v57, 1
    %v59 = vadd.f32 %v57, %v58
    %v60 = vsel %vm52, %v48, 0.0
    %v61 = vrot.slane %v60, 4
    %v62 = vadd.f32 %v60, %v61
    %v63 = vrot.slane %v62, 2
    %v64 = vadd.f32 %v62, %v63
    %v65 = vrot.slane %v64, 1
    %v66 = vadd.f32 %v64, %v65
    %v67 = vsel %vm52, %v45, 0.0
    %v68 = vrot.slane %v67, 4
    %v69 = vadd.f32 %v67, %v68
    %v70 = vrot.slane %v69, 2
    %v71 = vadd.f32 %v69, %v70
    %v72 = vrot.slane %v71, 1
    %v73 = vadd.f32 %v71, %v72
    %v74 = vsel %vm52, %v49, 0.0
    %v75 = vrot.slane %v74, 4
    %v76 = vadd.f32 %v74, %v75
    %v77 = vrot.slane %v76, 2
    %v78 = vadd.f32 %v76, %v77
    %v79 = vrot.slane %v78, 1
    %v80 = vadd.f32 %v78, %v79
    %v81 = vrsqrt.pop %v59
    %v82 = vmul.f32 %v59, %v81
    %vm83 = vcmp.eq.f32.partialorder %v59, inf
    %v84 = vsel %vm83, %v59, %v82
    %vm85 = vcmp.eq.f32.partialorder %v59, 0.0
    %v86 = vand.u32 %v59, 2147483648
    %v87 = vsel %vm85, %v86, %v84
    %v88 = vrsqrt.pop %v66
    %v89 = vmul.f32 %v66, %v88
    %vm90 = vcmp.eq.f32.partialorder %v66, inf
    %v91 = vsel %vm90, %v66, %v89
    %vm92 = vcmp.eq.f32.partialorder %v66, 0.0
    %v93 = vand.u32 %v66, 2147483648
    %v94 = vsel %vm92, %v93, %v91
    %v95 = vrsqrt.pop %v73
    %v96 = vmul.f32 %v73, %v95
    %vm97 = vcmp.eq.f32.partialorder %v73, inf
    %v98 = vsel %vm97, %v73, %v96
    %vm99 = vcmp.eq.f32.partialorder %v73, 0.0
    %v100 = vand.u32 %v73, 2147483648
    %v101 = vsel %vm99, %v100, %v98
    %v102 = vrsqrt.pop %v80
    %v103 = vmul.f32 %v80, %v102
    %vm104 = vcmp.eq.f32.partialorder %v80, inf
    %v105 = vsel %vm104, %v80, %v103
    %vm106 = vcmp.eq.f32.partialorder %v80, 0.0
    %v107 = vand.u32 %v80, 2147483648
    %v108 = vsel %vm106, %v107, %v105
    %v109 = vmul.f32 %v42, %v42
    %v110 = vmul.f32 %v43, %v43
    %v113 = vcombine.high %v109, %v109
    %v114 = vcombine.high %v110, %v110
    %v117 = vsel %vm52, %v109, 0.0
    %v118 = vrot.slane %v117, 4
    %v119 = vadd.f32 %v117, %v118
    %v120 = vrot.slane %v119, 2
    %v121 = vadd.f32 %v119, %v120
    %v122 = vrot.slane %v121, 1
    %v123 = vadd.f32 %v121, %v122
    %v124 = vsel %vm52, %v113, 0.0
    %v125 = vrot.slane %v124, 4
    %v126 = vadd.f32 %v124, %v125
    %v127 = vrot.slane %v126, 2
    %v128 = vadd.f32 %v126, %v127
    %v129 = vrot.slane %v128, 1
    %v130 = vadd.f32 %v128, %v129
    %v131 = vsel %vm52, %v110, 0.0
    %v132 = vrot.slane %v131, 4
    %v133 = vadd.f32 %v131, %v132
    %v134 = vrot.slane %v133, 2
    %v135 = vadd.f32 %v133, %v134
    %v136 = vrot.slane %v135, 1
    %v137 = vadd.f32 %v135, %v136
    %v138 = vsel %vm52, %v114, 0.0
    %v139 = vrot.slane %v138, 4
    %v140 = vadd.f32 %v138, %v139
    %v141 = vrot.slane %v140, 2
    %v142 = vadd.f32 %v140, %v141
    %v143 = vrot.slane %v142, 1
    %v144 = vadd.f32 %v142, %v143
    %v145 = vrsqrt.pop %v123
    %v146 = vmul.f32 %v123, %v145
    %vm147 = vcmp.eq.f32.partialorder %v123, inf
    %v148 = vsel %vm147, %v123, %v146
    %vm149 = vcmp.eq.f32.partialorder %v123, 0.0
    %v150 = vand.u32 %v123, 2147483648
    %v151 = vsel %vm149, %v150, %v148
    %v152 = vrsqrt.pop %v130
    %v153 = vmul.f32 %v130, %v152
    %vm154 = vcmp.eq.f32.partialorder %v130, inf
    %v155 = vsel %vm154, %v130, %v153
    %vm156 = vcmp.eq.f32.partialorder %v130, 0.0
    %v157 = vand.u32 %v130, 2147483648
    %v158 = vsel %vm156, %v157, %v155
    %v159 = vrsqrt.pop %v137
    %v160 = vmul.f32 %v137, %v159
    %vm161 = vcmp.eq.f32.partialorder %v137, inf
    %v162 = vsel %vm161, %v137, %v160
    %vm163 = vcmp.eq.f32.partialorder %v137, 0.0
    %v164 = vand.u32 %v137, 2147483648
    %v165 = vsel %vm163, %v164, %v162
    %v166 = vrsqrt.pop %v144
    %v167 = vmul.f32 %v144, %v166
    %vm168 = vcmp.eq.f32.partialorder %v144, inf
    %v169 = vsel %vm168, %v144, %v167
    %vm170 = vcmp.eq.f32.partialorder %v144, 0.0
    %v171 = vand.u32 %v144, 2147483648
    %v172 = vsel %vm170, %v171, %v169
    %v173 = vsub.f32 %v87, %v151
    %v174 = vsub.f32 %v94, %v158
    %v175 = vsub.f32 %v101, %v165
    %v176 = vsub.f32 %v108, %v172
    %v177 = vmul.f32 %v173, %v173
    %v178 = vmul.f32 %v174, %v174
    %v179 = vmul.f32 %v175, %v175
    %v180 = vmul.f32 %v176, %v176
    %p181 = scmp.eq.s32.totalorder 0, 0
    // Predicated region
    $region18: #{tpu_custom_call.1} parent=1 // pred_check
      %p182 = pneg %p181
    $region19: #{tpu_custom_call.1} parent=1 // pred_check_branch
      %184 = sbr.rel (%p182) target = $region21
    $region20: #{tpu_custom_call.1} parent=1 // pred_region
      %v189 = vcombine.low %v177, %v178
      %v191 = vunpack.c.l.s4 1983009808
      %v192 = vunpack.c.0.s8 %v191
      %v193 = vlaneseq
      %v194 = vshrl.u32 %v193, 7
      %v195 = vsub.s32 %v192, %v194
      %v196 = vrot.slane %v189, %v195
      %v197 = vcombine.low %v179, %v180
      %v199 = vunpack.c.l.s4 1983009808
      %v200 = vunpack.c.0.s8 %v199
      %v201 = vlaneseq
      %v202 = vshrl.u32 %v201, 7
      %v203 = vsub.s32 %v200, %v202
      %v204 = vrot.slane %v197, %v203
      %vm205 = vcmask 1044484
      %v206 = vsel %vm205, %v196, %v196
      %vm207 = vcmask 1046534
      %v208 = vsel %vm207, %v196, %v206
      %v209 = vrot.slane %v204, 7
      %vm210 = vcmask 1041409
      %v211 = vsel %vm210, %v209, %v208
      %vm212 = vcmask 1043459
      %v213 = vsel %vm212, %v209, %v211
      %vm214 = vcmask 1045509
      %v215 = vsel %vm214, %v209, %v213
      %vm216 = vcmask 1047559
      %v217 = vsel %vm216, %v209, %v215
      %219 = vst [vmem:[#allocation7] sm:$0xf] %v217
    $region21: #{tpu_custom_call.1} parent=1 // pred_fallthru
      _
    %p220 = scmp.ne.s32.totalorder 0, 0
    // Predicated region
    $region22: #{tpu_custom_call.1} parent=1 // pred_check
      %p221 = pneg %p220
    $region23: #{tpu_custom_call.1} parent=1 // pred_check_branch
      %223 = sbr.rel (%p221) target = $region25
    $region24: #{tpu_custom_call.1} parent=1 // pred_region
      %v224 = vld [vmem:[#allocation7] sm:$0xf]
      %v229 = vcombine.low %v177, %v178
      %v231 = vunpack.c.l.s4 1983009808
      %v232 = vunpack.c.0.s8 %v231
      %v233 = vlaneseq
      %v234 = vshrl.u32 %v233, 7
      %v235 = vsub.s32 %v232, %v234
      %v236 = vrot.slane %v229, %v235
      %v237 = vcombine.low %v179, %v180
      %v239 = vunpack.c.l.s4 1983009808
      %v240 = vunpack.c.0.s8 %v239
      %v241 = vlaneseq
      %v242 = vshrl.u32 %v241, 7
      %v243 = vsub.s32 %v240, %v242
      %v244 = vrot.slane %v237, %v243
      %vm245 = vcmask 1044484
      %v246 = vsel %vm245, %v236, %v236
      %vm247 = vcmask 1046534
      %v248 = vsel %vm247, %v236, %v246
      %v249 = vrot.slane %v244, 7
      %vm250 = vcmask 1041409
      %v251 = vsel %vm250, %v249, %v248
      %vm252 = vcmask 1043459
      %v253 = vsel %vm252, %v249, %v251
      %vm254 = vcmask 1045509
      %v255 = vsel %vm254, %v249, %v253
      %vm256 = vcmask 1047559
      %v257 = vsel %vm256, %v249, %v255
      %v259 = vadd.f32 %v224, %v257
      %260 = vst [vmem:[#allocation7] sm:$0xf] %v259
    $region25: #{tpu_custom_call.1} parent=1 // pred_fallthru
      _
    // Predicated region
    $region26: #{tpu_custom_call.1} parent=1 // pred_check
      _
    $region27: #{tpu_custom_call.1} parent=1 // pred_check_branch
      %262 = sbr.rel (0) target = $region29
    $region28: #{tpu_custom_call.1} parent=1 // pred_region
      %s264 = ssub.s32 64, 64
      %265 = vsyncadd [#allocation4], %s264
      %s267 = sshll.u32 [#allocation7], 4
      %s268 = int_to_ptr.vmem [resolvable:$true] %s267
      %270 = dma.vmem_to_hbm [thread:$0]  %s268, 64, %s2, [#allocation4]
    $region29: #{tpu_custom_call.1} parent=1 // pred_fallthru
      _
    // Predicated region
    $region30: #{tpu_custom_call.1} parent=1 // pred_check
      _
    $region31: #{tpu_custom_call.1} parent=1 // pred_check_branch
      %272 = sbr.rel (0) target = $region33
    $region32: #{tpu_custom_call.1} parent=1 // pred_region
      %273 = dma.done [#allocation4], 64
    $region33: #{tpu_custom_call.1} parent=1 // pred_fallthru
      _
    %274 = vsyncpa [#allocation3], 1
    %275 = vsyncpa [#allocation6], 1
    %276 = vsyncpa [#allocation4], 1

</llo_original>
